<compile_context>
chip_gen: v6e
topology: v6e:2x2x1
jax: 0.10.0
libtpu: 0.0.40
codegen_flags: <defaults>
</compile_context>

<pallas_src>
import jax
import jax.numpy as jnp
from jax.experimental import pallas as pl
from jax.experimental.pallas import tpu as pltpu


def _scale_mul_kernel(e_ref, x_ref, out_ref):
    # e_ref: (1, td) precomputed exp(+/- s) in x.dtype; x_ref/out_ref: (tb, td).
    out_ref[...] = e_ref[...] * x_ref[...]


def scale_forward(
    x,
    s,
    reverse,
    *,
    target_tile_bytes=4 * 1024 * 1024,   # ~4 MiB x-tile (+ matching out tile)
    min_pallas_bytes=1 * 1024 * 1024,    # below this, plain XLA is faster
    vmem_limit_bytes=48 * 1024 * 1024,   # fits v7x's 64 MiB with headroom
):
    """Pallas implementation of Scale.forward.

    Args:
      x: (B, D) array.
      s: (1, D) parameter array.
      reverse: Python bool (static), selects exp(-s) vs exp(s).
    Returns:
      (result, s) matching the PyTorch module.
    """
    B, D = x.shape
    assert s.shape == (1, D)
    sign = -1.0 if reverse else 1.0

    # Hoist the exp: one (1, D) EUP pass in the wrapper instead of per tile.
    exp_s = jnp.exp(sign * s.astype(jnp.float32)).astype(x.dtype)

    itemsize = jnp.dtype(x.dtype).itemsize
    total_bytes = B * D * itemsize

    # Tiny problems: kernel-launch + single-grid-step overhead dominates.
    if total_bytes < min_pallas_bytes:
        return exp_s * x, s

    # Lane-dense fold for narrow feature dims: pack k = 128//D rows per lane
    # row so the stored last dim is a full multiple of 128 (unmasked stores).
    folded = False
    Bk, Dk, xk, ek = B, D, x, exp_s
    if D < 128 and 128 % D == 0 and B % (128 // D) == 0:
        k = 128 // D
        Bk, Dk = B // k, D * k
        xk = x.reshape(Bk, Dk)          # row-major regroup, free
        ek = jnp.tile(exp_s, (1, k))    # (1, 128)
        folded = True

    sublane = 16 if itemsize < 4 else 8  # bf16 packs 16 rows per vreg

    # Feature tiling: keep full D when a sublane-high row-tile fits the budget,
    # otherwise tile D in multiples of 128 so wide models stay inside VMEM.
    if Dk * itemsize * sublane <= target_tile_bytes:
        td = Dk
    else:
        td = max((target_tile_bytes // (sublane * itemsize)) // 128 * 128, 128)

    # Batch tiling: largest sublane-multiple tile within the byte budget.
    tb = (target_tile_bytes // (td * itemsize)) // sublane * sublane
    tb = max(tb, sublane)
    if Bk <= tb:
        tb = Bk  # single tile covers the whole batch
    grid = (pl.cdiv(Bk, tb), pl.cdiv(Dk, td))

    result = pl.pallas_call(
        _scale_mul_kernel,
        out_shape=jax.ShapeDtypeStruct((Bk, Dk), x.dtype),
        grid_spec=pltpu.PrefetchScalarGridSpec(
            num_scalar_prefetch=0,
            grid=grid,
            in_specs=[
                pl.BlockSpec((1, td), lambda i, j: (0, j)),    # exp(s): resident per D-tile
                pl.BlockSpec((tb, td), lambda i, j: (i, j)),   # x: tiled over batch x feature
            ],
            out_specs=pl.BlockSpec((tb, td), lambda i, j: (i, j)),
        ),
        compiler_params=pltpu.CompilerParams(
            # Both axes are independent streaming tiles.
            dimension_semantics=(pltpu.PARALLEL, pltpu.PARALLEL),
            vmem_limit_bytes=vmem_limit_bytes,
        ),
    )(ek, xk)

    if folded:
        result = result.reshape(B, D)
    return result, s


if __name__ == "__main__":
    key = jax.random.PRNGKey(0)
    B, D = 8, 128  # batch, input_dim (lane-friendly small shapes)

    kx, ks = jax.random.split(key)
    x = jax.random.normal(kx, (B, D), dtype=jnp.float32)
    # nn.Parameter(torch.zeros(1, input_dim)) -> zeros; perturb deterministically
    # so the exp actually does something, while staying fully in-script.
    s = 0.1 * jax.random.normal(ks, (1, D), dtype=jnp.float32)

    # forward (reverse=False) and reverse=True through the Pallas path
    # (min_pallas_bytes=0 forces the kernel for this small demo shape).
    result_fwd, s_out = scale_forward(x, s, reverse=False, min_pallas_bytes=0)
    result_rev, _ = scale_forward(x, s, reverse=True, min_pallas_bytes=0)
    jax.block_until_ready((result_fwd, result_rev, s_out))

    ref_fwd = jnp.exp(s) * x
    ref_rev = jnp.exp(-s) * x
    assert jnp.allclose(result_fwd, ref_fwd, atol=1e-6)
    assert jnp.allclose(result_rev, ref_rev, atol=1e-6)
    assert jnp.allclose(s_out, s)

    # tiny-problem fallback (default threshold) must match too
    tiny_fwd, _ = scale_forward(x, s, reverse=False)
    assert jnp.allclose(tiny_fwd, ref_fwd, atol=1e-6)

    # multi-tile path (tb < B): larger batch with a small tile budget
    B2 = 4096 + 8
    x2 = jax.random.normal(kx, (B2, D), dtype=jnp.float32)
    r2, _ = scale_forward(x2, s, reverse=False,
                          target_tile_bytes=64 * 1024, min_pallas_bytes=0)
    jax.block_until_ready(r2)
    assert jnp.allclose(r2, jnp.exp(s) * x2, atol=1e-6)

    # narrow-D lane-dense fold path (D < 128)
    Dn, Bn = 32, 64
    xn = jax.random.normal(kx, (Bn, Dn), dtype=jnp.float32)
    sn = 0.1 * jax.random.normal(ks, (1, Dn), dtype=jnp.float32)
    rn, _ = scale_forward(xn, sn, reverse=True, min_pallas_bytes=0)
    jax.block_until_ready(rn)
    assert jnp.allclose(rn, jnp.exp(-sn) * xn, atol=1e-6)

    print("KERNEL_OK")
</pallas_src>

<mosaic_0001>
module attributes {stable_mosaic.version = 11 : i64} {
  func.func @_scale_mul_kernel(%arg0: i32, %arg1: i32, %arg2: memref<1x128xf32, #tpu.memory_space<vmem>>, %arg3: memref<8x128xf32, #tpu.memory_space<vmem>>, %arg4: memref<8x128xf32, #tpu.memory_space<vmem>>) attributes {dimension_semantics = [#tpu.dimension_semantics<parallel>, #tpu.dimension_semantics<parallel>], iteration_bounds = array<i64: 1, 1>, scalar_prefetch = 0 : i64, scratch_operands = 0 : i64, tpu.core_type = #tpu.core_type<tc>, window_params = [{transform_indices = @transform_0, window_bounds = array<i64: 1, 128>}, {transform_indices = @transform_1, window_bounds = array<i64: 8, 128>}, {transform_indices = @transform_2, window_bounds = array<i64: 8, 128>}]} {
    %c0 = arith.constant 0 : index
    %c0_0 = arith.constant 0 : index
    %0 = vector.load %arg2[%c0, %c0_0] : memref<1x128xf32, #tpu.memory_space<vmem>>, vector<1x128xf32>
    %c0_1 = arith.constant 0 : index
    %c0_2 = arith.constant 0 : index
    %1 = vector.load %arg3[%c0_1, %c0_2] : memref<8x128xf32, #tpu.memory_space<vmem>>, vector<8x128xf32>
    %2 = vector.broadcast %0 : vector<1x128xf32> to vector<8x128xf32>
    %3 = arith.mulf %2, %1 : vector<8x128xf32>
    %c0_3 = arith.constant 0 : index
    %c0_4 = arith.constant 0 : index
    %4 = vector.load %arg4[%c0_3, %c0_4] : memref<8x128xf32, #tpu.memory_space<vmem>>, vector<8x128xf32>
    tpu.vector_store %arg4[%c0_3, %c0_4], %3 {strides = array<i32>} : memref<8x128xf32, #tpu.memory_space<vmem>>, vector<8x128xf32>,
    return
  }
  func.func @transform_0(%arg0: i32, %arg1: i32) -> (i32, i32) {
    %c0_i32 = arith.constant 0 : i32
    %c0_i32_0 = arith.constant 0 : i32
    return %c0_i32, %arg1 : i32, i32
  }
  func.func @transform_1(%arg0: i32, %arg1: i32) -> (i32, i32) {
    %c0_i32 = arith.constant 0 : i32
    return %arg0, %arg1 : i32, i32
  }
  func.func @transform_2(%arg0: i32, %arg1: i32) -> (i32, i32) {
    %c0_i32 = arith.constant 0 : i32
    return %arg0, %arg1 : i32, i32
  }
}

</mosaic_0001>

<llo_original>
// kernel: tpu_custom_call.1
$region0: #{tpu_custom_call.1}
  #allocation0 [shape = 'u32[]', space=smem, size = 0x4, offset = 0x4, fixed_abs, tag = 'smem constant byte address 0x4 - core index']
  #allocation1 [shape = 'u32[144,128]{1,0:T(1,128)}', space=vmem, size = 0x12000, scoped, tag = 'internal scratch']
  %s0 = inlined_call_operand.hbm [shape: f32[1,128], index: 0, kind: input, shape index: {}]
  %s1 = inlined_call_operand.hbm [shape: f32[8,128], index: 1, kind: input, shape index: {}]
  %s2 = inlined_call_operand.hbm [shape: f32[8,128], index: 2, kind: output, shape index: {}]
  %s3 = sld [smem:[#allocation0]]
  $region26: #{tpu_custom_call.1} parent=0
    _
  %s5 = ssub.s32 1, %s3
  %s6 = scalar_select 0, %s5, %s3
  $region1: #{tpu_custom_call.1} parent=0
    #allocation2 [shape = 'u8[512]{0}', space=vmem, size = 0x400, scoped, tag = 'input window, operand 0, single buffered']
    #allocation3 [shape = 's32[1]{0}', space=sflag, size = 0x4, scoped, tag = 'scoped memory for tpu_custom_call.1']
    #allocation4 [shape = 's32[1]{0}', space=sflag, size = 0x4, scoped, tag = 'scoped memory for tpu_custom_call.1']
    #allocation5 [shape = 'u8[4096]{0}', space=vmem, size = 0x1000, scoped, tag = 'input window, operand 1, single buffered']
    #allocation6 [shape = 's32[1]{0}', space=sflag, size = 0x4, scoped, tag = 'scoped memory for tpu_custom_call.1']
    #allocation7 [shape = 'u8[4096]{0}', space=vmem, size = 0x1000, scoped, tag = 'output window, operand 0, single buffered']
    %7 = vsyncpa [#allocation3], 0
    %8 = vsyncpa [#allocation6], 0
    %9 = vsyncpa [#allocation4], 0
    // Predicated region
    $region2: #{tpu_custom_call.1} parent=1 // pred_check
      _
    $region3: #{tpu_custom_call.1} parent=1 // pred_check_branch
      %11 = sbr.rel (0) target = $region5
    $region4: #{tpu_custom_call.1} parent=1 // pred_region
      %s13 = ssub.s32 16, 16
      %14 = vsyncadd [#allocation3], %s13
      %s16 = sshll.u32 [#allocation2], 4
      %s17 = int_to_ptr.vmem [resolvable:$true] %s16
      %19 = dma.hbm_to_vmem [thread:$0]  %s0, 16, %s17, [#allocation3]
    $region5: #{tpu_custom_call.1} parent=1 // pred_fallthru
      _
    // Predicated region
    $region6: #{tpu_custom_call.1} parent=1 // pred_check
      _
    $region7: #{tpu_custom_call.1} parent=1 // pred_check_branch
      %21 = sbr.rel (0) target = $region9
    $region8: #{tpu_custom_call.1} parent=1 // pred_region
      %s23 = ssub.s32 128, 128
      %24 = vsyncadd [#allocation6], %s23
      %s26 = sshll.u32 [#allocation5], 4
      %s27 = int_to_ptr.vmem [resolvable:$true] %s26
      %29 = dma.hbm_to_vmem [thread:$0]  %s1, 128, %s27, [#allocation6]
    $region9: #{tpu_custom_call.1} parent=1 // pred_fallthru
      _
    // Predicated region
    $region10: #{tpu_custom_call.1} parent=1 // pred_check
      _
    $region11: #{tpu_custom_call.1} parent=1 // pred_check_branch
      %31 = sbr.rel (0) target = $region13
    $region12: #{tpu_custom_call.1} parent=1 // pred_region
      %32 = dma.done [#allocation3], 16
    $region13: #{tpu_custom_call.1} parent=1 // pred_fallthru
      _
    // Predicated region
    $region14: #{tpu_custom_call.1} parent=1 // pred_check
      _
    $region15: #{tpu_custom_call.1} parent=1 // pred_check_branch
      %34 = sbr.rel (0) target = $region17
    $region16: #{tpu_custom_call.1} parent=1 // pred_region
      %35 = dma.done [#allocation6], 128
    $region17: #{tpu_custom_call.1} parent=1 // pred_fallthru
      _
    %v36 = vld [vmem:[#allocation2] sm:$0x1]
    %v37 = vld [vmem:[#allocation5] sm:$0xff]
    %v39 = vlaneseq
    %v40 = vshrl.u32 %v39, 7
    %v41 = vsub.s32 0, %v40
    %v42 = vrot.slane %v36, %v41
    %v44 = vmul.f32 %v42, %v37
    %45 = vst [vmem:[#allocation7] sm:$0xff] %v44
    // Predicated region
    $region18: #{tpu_custom_call.1} parent=1 // pred_check
      _
    $region19: #{tpu_custom_call.1} parent=1 // pred_check_branch
      %47 = sbr.rel (0) target = $region21
    $region20: #{tpu_custom_call.1} parent=1 // pred_region
      %s49 = ssub.s32 128, 128
      %50 = vsyncadd [#allocation4], %s49
      %s52 = sshll.u32 [#allocation7], 4
      %s53 = int_to_ptr.vmem [resolvable:$true] %s52
      %55 = dma.vmem_to_hbm [thread:$0]  %s53, 128, %s2, [#allocation4]
    $region21: #{tpu_custom_call.1} parent=1 // pred_fallthru
      _
    // Predicated region
    $region22: #{tpu_custom_call.1} parent=1 // pred_check
      _
    $region23: #{tpu_custom_call.1} parent=1 // pred_check_branch
      %57 = sbr.rel (0) target = $region25
    $region24: #{tpu_custom_call.1} parent=1 // pred_region
      %58 = dma.done [#allocation4], 128
    $region25: #{tpu_custom_call.1} parent=1 // pred_fallthru
      _
    %59 = vsyncpa [#allocation3], 1
    %60 = vsyncpa [#allocation6], 1
    %61 = vsyncpa [#allocation4], 1

</llo_original>
